<compile_context>
chip_gen: v5e
topology: v5e:2x2
jax: 0.10.0
libtpu: 0.0.40
codegen_flags: <defaults>
</compile_context>

<pallas_src>
import functools

import jax
import jax.numpy as jnp
from jax import lax
from jax.experimental import pallas as pl
from jax.experimental.pallas import tpu as pltpu


def _rel_pos(kernel_size):
    # Equivalent of rel_pos(): (1, 2, K, K), meshgrid with 'ij' indexing.
    lin = jnp.linspace(-1.0, 1.0, kernel_size)
    gi, gj = jnp.meshgrid(lin, lin, indexing="ij")
    return jnp.stack([gi, gj], axis=0)[None]


def _largest_divisor_leq(n, cap):
    c = max(1, min(n, cap))
    while n % c:
        c -= 1
    return c


def _vmem_capacity_bytes():
    try:
        return int(pltpu.get_tpu_info().vmem_capacity_bytes)
    except Exception:
        return 64 * 2 ** 20          # conservative: v7x physical VMEM


# ---------------------------------------------------------------------------
# Pallas kernel: grouped "depthwise" conv2d (the hot path of APR.forward).
#
# Grid = (N, planes // c_blk).  Each step produces one (c_blk, H_out, W_out)
# output block for one batch element, W on the lane axis, H on sublanes.
# ---------------------------------------------------------------------------
def _dw_conv_kernel(x_ref, w_ref, o_ref, *scratch, ksize, stride, pad,
                    c_blk, g_in, h_out, w_out, row_chunk, n_chunks,
                    use_scratch):
    # x_ref : (1, g_in*ss, SHin, SWin)  input block (phase-split if stride>1)
    # w_ref : (planes*K*K,) f32 in SMEM — per-(out-channel, tap) scalars
    # o_ref : (1, c_blk, H_out, W_out)
    # scratch (optional): (g_in*ss, SHin+2*pad, SWin+2*pad) f32 staging buffer
    K = ksize
    s = stride
    ss = s * s
    kk = K * K
    nc_in = g_in * ss
    m_blk = c_blk // g_in            # out channels sharing one staged input ch
    shin, swin = x_ref.shape[2], x_ref.shape[3]
    cb0 = pl.program_id(1) * c_blk   # first global out channel of this block

    if use_scratch:
        xv = scratch[0]
        SH, SW = xv.shape[1], xv.shape[2]
        if pad > 0:
            # Zero only the halo ring, not the whole scratch.
            zr = jnp.zeros((nc_in, pad, SW), jnp.float32)
            xv[:, 0:pad, :] = zr
            xv[:, SH - pad:SH, :] = zr
            zc = jnp.zeros((nc_in, SH, pad), jnp.float32)
            xv[:, :, 0:pad] = zc
            xv[:, :, SW - pad:SW] = zc
        # One cast+copy of the block's input channels (no per-out-channel
        # replication: m>1 channels broadcast from the shared plane below).
        xv[:, pad:pad + shin, pad:pad + swin] = x_ref[0].astype(jnp.float32)

        def load_tap(chan, ro, dco):
            return xv[chan, pl.ds(ro, row_chunk), pl.ds(dco, w_out)]
    else:
        # Identity staging skipped: read taps straight from the input block.
        def load_tap(chan, ro, dco):
            return x_ref[0, chan, pl.ds(ro, row_chunk),
                         pl.ds(dco, w_out)].astype(jnp.float32)

    def do_chunk(r0):
        accs = [jnp.zeros((row_chunk, w_out), jnp.float32)
                for _ in range(c_blk)]
        for ky in range(K):
            for kx in range(K):
                t = ky * K + kx
                ph = (ky % s) * s + (kx % s)
                dro, dco = ky // s, kx // s
                for gi in range(g_in):
                    src = load_tap(gi * ss + ph, r0 + dro, dco)
                    for c in range(gi * m_blk, (gi + 1) * m_blk):
                        # SMEM scalar -> splat happens inside the
                        # vector*scalar multiply (no broadcast_in_dim ops).
                        wv = w_ref[(cb0 + c) * kk + t]
                        accs[c] = accs[c] + src * wv
        for c in range(c_blk):
            o_ref[0, c, pl.ds(r0, row_chunk), :] = accs[c].astype(o_ref.dtype)

    if n_chunks == 1:
        do_chunk(0)
    else:
        exact = (h_out % row_chunk) == 0

        def body(i, carry):
            r0 = i * row_chunk
            if exact:
                r0 = pl.multiple_of(r0, row_chunk)
            else:
                r0 = jnp.minimum(r0, h_out - row_chunk)   # overlapping tail
            do_chunk(r0)
            return carry

        lax.fori_loop(0, n_chunks, body, 0, unroll=(n_chunks <= 4))


class APRPallas:
    def __init__(self, planes, kernel_size, n_points, stride, padding,
                 groups, key):
        assert planes % groups == 0
        self.planes = planes
        self.kernel_size = kernel_size
        self.n_points = n_points
        self.stride, self.padding, self.groups = stride, padding, groups
        self.init_radius = 2.0 * (2.0 / kernel_size)

        self.kernel_coord = _rel_pos(kernel_size)                 # (1, 2, K, K)

        k1, k2 = jax.random.split(key)
        # trunc_normal_(std=0.2, a=-1, b=1): bounds are absolute => +-5 sigma.
        self.weight_coord = 0.2 * jax.random.truncated_normal(
            k1, -5.0, 5.0, (1, n_points, 2), jnp.float32)
        self.radius = jnp.full((1, n_points, 1, 1), self.init_radius,
                               jnp.float32)
        # trunc_normal_(std=0.02): default +-2 absolute bounds (~untruncated).
        self.weights = jnp.clip(
            0.02 * jax.random.normal(k2, (1, planes, n_points), jnp.float32),
            -2.0, 2.0)

    def radius_clip(self, min_radius=0.001, max_radius=1.0):
        self.radius = jnp.clip(self.radius, min_radius, max_radius)

    def make_kernels(self):
        # Tiny (planes x n_points) @ (n_points x K*K) matmul run once per
        # forward -> plain JAX (a pallas_call here only adds launch overhead).
        K = self.kernel_size
        wc = self.weight_coord[0]                                 # (n_points, 2)
        kc = self.kernel_coord[0].reshape(2, K * K)               # (2, K*K)
        rad = self.radius[0, :, 0, :]                             # (n_points, 1)
        dist = (jnp.abs(wc[:, 0:1] - kc[0:1, :])
                + jnp.abs(wc[:, 1:2] - kc[1:2, :]))               # (n_points, K*K)
        basis = jnp.maximum(1.0 - dist / rad, 0.0)                # ReLU
        kern = jnp.dot(self.weights[0], basis)                    # (planes, K*K)
        kern = kern.reshape(self.planes, K, K)
        # torch: flip(permute(0, 2, 1), dims=(1,))
        return jnp.flip(jnp.transpose(kern, (0, 2, 1)), axis=1)

    def __call__(self, x):
        # x: (N, C_in, H, W) NCHW with C_in == groups (1 input ch per group).
        K, s, p, g = self.kernel_size, self.stride, self.padding, self.groups
        planes = self.planes
        n, c_in, h, w = x.shape
        assert c_in == g, "APR uses 1 input channel per group"
        m = planes // g                                           # out ch / group

        h_out = (h + 2 * p - K) // s + 1
        w_out = (w + 2 * p - K) // s + 1
        kernels = self.make_kernels()                             # (planes, K, K)
        kernels_flat = kernels.astype(jnp.float32).reshape(planes * K * K)

        ss = s * s
        if s == 1:
            x_ps = x                     # no wrapper HBM pass at all
            pad_k = p                    # halo handled in-kernel (VMEM)
        else:
            # Pixel-unshuffle (space-to-depth) of the zero-padded input so
            # every in-kernel tap load is unit-stride on sublanes and lanes.
            hp, wp = h + 2 * p, w + 2 * p
            hpp, wpp = -(-hp // s) * s, -(-wp // s) * s
            xp = jnp.pad(x, ((0, 0), (0, 0),
                             (p, hpp - h - p), (p, wpp - w - p)))
            x_ps = xp.reshape(n, c_in, hpp // s, s, wpp // s, s)
            x_ps = jnp.transpose(x_ps, (0, 1, 3, 5, 2, 4))
            x_ps = x_ps.reshape(n, c_in * ss, hpp // s, wpp // s)
            pad_k = 0
        shin, swin = x_ps.shape[2], x_ps.shape[3]
        sh_s, sw_s = shin + 2 * pad_k, swin + 2 * pad_k

        # Staging scratch only when it does real work (halo pad or cast).
        use_scratch = (pad_k > 0) or (x.dtype != jnp.float32)

        # ----- output-channel block choice.
        itemsize = jnp.dtype(x.dtype).itemsize
        lane_tiles = -(-w_out // 128)
        cap = max(1, min(8, 24 // max(1, lane_tiles)))            # vreg budget
        if m == 1:
            c_blk = _largest_divisor_leq(planes, cap)
        else:
            # One full group per block when possible so each group's single
            # input channel is DMA'd from HBM exactly once.
            c_blk = m if m <= cap else _largest_divisor_leq(m, cap)

        def g_in_of(cb):
            return cb // m if cb % m == 0 else 1

        def vmem_bytes(cb):
            gi = g_in_of(cb)
            in_blk = gi * ss * shin * swin * itemsize
            out_blk = cb * h_out * w_out * itemsize
            stage = gi * ss * sh_s * sw_s * 4 if use_scratch else 0
            return 2 * in_blk + 2 * out_blk + stage               # x2: dbl-buf

        vmem_cap = _vmem_capacity_bytes()
        budget = min(int(0.7 * vmem_cap), 96 * 2 ** 20)

        def shrink(cb):
            base = planes if m == 1 else m
            return _largest_divisor_leq(base, cb - 1)

        while c_blk > 1 and vmem_bytes(c_blk) > budget:
            c_blk = shrink(c_blk)
        # Megacore / pipelining: aim for >= 4 grid steps (>= 2 per v7x core).
        while c_blk > 1 and n * (planes // c_blk) < 4:
            c_blk = shrink(c_blk)

        n_cb = planes // c_blk
        g_in = g_in_of(c_blk)

        # Row chunking keeps the per-chunk accumulators inside the vreg file.
        ri = min(h_out, 8 * max(1, 24 // max(1, c_blk * lane_tiles)))
        ri = max(1, ri)
        n_chunks = -(-h_out // ri)

        if c_blk % m == 0:
            x_index_map = lambda b, cb: (b, cb, 0, 0)
        else:
            # c_blk < m: several blocks share one group's input channel.
            x_index_map = lambda b, cb: (b, (cb * c_blk) // m, 0, 0)

        scratch_shapes = ([pltpu.VMEM((g_in * ss, sh_s, sw_s), jnp.float32)]
                          if use_scratch else [])

        vmem_limit = int(min(int(0.85 * vmem_cap),
                             max(vmem_bytes(c_blk) + (2 << 20), 16 << 20)))

        kernel = functools.partial(
            _dw_conv_kernel, ksize=K, stride=s, pad=pad_k, c_blk=c_blk,
            g_in=g_in, h_out=h_out, w_out=w_out, row_chunk=ri,
            n_chunks=n_chunks, use_scratch=use_scratch)

        out = pl.pallas_call(
            kernel,
            out_shape=jax.ShapeDtypeStruct((n, planes, h_out, w_out), x.dtype),
            grid=(n, n_cb),
            in_specs=[
                pl.BlockSpec((1, g_in * ss, shin, swin), x_index_map),
                pl.BlockSpec(memory_space=pltpu.MemorySpace.SMEM),
            ],
            out_specs=pl.BlockSpec((1, c_blk, h_out, w_out),
                                   lambda b, cb: (b, cb, 0, 0)),
            scratch_shapes=scratch_shapes,
            compiler_params=pltpu.CompilerParams(
                dimension_semantics=("parallel", "parallel"),
                vmem_limit_bytes=vmem_limit),
        )(x_ps, kernels_flat)
        return out


def _reference_conv(x, kernels, stride, padding, groups):
    # Same semantics as torch F.conv2d(x, kernels.unsqueeze(1), ...).
    return jax.lax.conv_general_dilated(
        x, kernels[:, None, :, :],
        window_strides=(stride, stride),
        padding=((padding, padding), (padding, padding)),
        dimension_numbers=("NCHW", "OIHW", "NCHW"),
        feature_group_count=groups)


if __name__ == "__main__":
    key = jax.random.PRNGKey(0)

    configs = [
        # (N, C_in, H, W, planes, K, n_points, stride, padding, groups)
        (2, 4, 16, 16, 4, 3, 8, 1, 1, 4),   # base depthwise config (m = 1)
        (2, 4, 16, 16, 4, 3, 8, 2, 1, 4),   # stride = 2 (pixel-unshuffle path)
        (2, 4, 16, 16, 8, 3, 8, 1, 1, 4),   # m = 2 (2 output channels / group)
    ]

    ok = True
    for cfg in configs:
        n, c_in, h, w, planes, ksz, npts, s, p, grp = cfg
        key, kx, kp = jax.random.split(key, 3)
        apr = APRPallas(planes, ksz, npts, s, p, grp, kp)
        x = jax.random.normal(kx, (n, c_in, h, w), jnp.float32)

        y = apr(x)
        jax.block_until_ready(y)

        ref = _reference_conv(x, apr.make_kernels(), s, p, grp)
        if y.shape != ref.shape or not jnp.allclose(y, ref, atol=1e-4,
                                                    rtol=1e-4):
            ok = False
            print("MISMATCH", cfg, float(jnp.max(jnp.abs(y - ref))))

    if ok:
        print("KERNEL_OK")
</pallas_src>

<mosaic_0001>
module attributes {stable_mosaic.version = 11 : i64} {
  func.func @_dw_conv_kernel(%arg0: i32, %arg1: i32, %arg2: memref<1x2x16x16xf32, #tpu.memory_space<vmem>>, %arg3: memref<36xf32, #tpu.memory_space<smem>>, %arg4: memref<1x2x16x16xf32, #tpu.memory_space<vmem>>, %arg5: memref<2x18x18xf32, #tpu.memory_space<vmem>>) attributes {dimension_semantics = [#tpu.dimension_semantics<parallel>, #tpu.dimension_semantics<parallel>], iteration_bounds = array<i64: 2, 2>, scalar_prefetch = 0 : i64, scratch_operands = 1 : i64, tpu.core_type = #tpu.core_type<tc>, window_params = [{transform_indices = @transform_0, window_bounds = array<i64: 1, 2, 16, 16>}, {transform_indices = @transform_1, window_bounds = array<i64: 36>}, {transform_indices = @transform_2, window_bounds = array<i64: 1, 2, 16, 16>}]} {
    %c2_i32 = arith.constant 2 : i32
    %0 = arith.muli %arg1, %c2_i32 : i32
    %cst = arith.constant 0.000000e+00 : f32
    %1 = vector.broadcast %cst : f32 to vector<2x1x18xf32>
    %c0 = arith.constant 0 : index
    %c0_0 = arith.constant 0 : index
    %c0_1 = arith.constant 0 : index
    %2 = vector.load %arg5[%c0, %c0_0, %c0_1] : memref<2x18x18xf32, #tpu.memory_space<vmem>>, vector<2x1x18xf32>
    tpu.vector_store %arg5[%c0, %c0_0, %c0_1], %1 {strides = array<i32>} : memref<2x18x18xf32, #tpu.memory_space<vmem>>, vector<2x1x18xf32>,
    %c0_2 = arith.constant 0 : index
    %c17 = arith.constant 17 : index
    %c0_3 = arith.constant 0 : index
    %3 = vector.load %arg5[%c0_2, %c17, %c0_3] : memref<2x18x18xf32, #tpu.memory_space<vmem>>, vector<2x1x18xf32>
    tpu.vector_store %arg5[%c0_2, %c17, %c0_3], %1 {strides = array<i32>} : memref<2x18x18xf32, #tpu.memory_space<vmem>>, vector<2x1x18xf32>,
    %cst_4 = arith.constant 0.000000e+00 : f32
    %4 = vector.broadcast %cst_4 : f32 to vector<2x18x1xf32>
    %c0_5 = arith.constant 0 : index
    %c0_6 = arith.constant 0 : index
    %c0_7 = arith.constant 0 : index
    %5 = vector.load %arg5[%c0_5, %c0_6, %c0_7] : memref<2x18x18xf32, #tpu.memory_space<vmem>>, vector<2x18x1xf32>
    tpu.vector_store %arg5[%c0_5, %c0_6, %c0_7], %4 {strides = array<i32>} : memref<2x18x18xf32, #tpu.memory_space<vmem>>, vector<2x18x1xf32>,
    %c0_8 = arith.constant 0 : index
    %c0_9 = arith.constant 0 : index
    %c17_10 = arith.constant 17 : index
    %6 = vector.load %arg5[%c0_8, %c0_9, %c17_10] : memref<2x18x18xf32, #tpu.memory_space<vmem>>, vector<2x18x1xf32>
    tpu.vector_store %arg5[%c0_8, %c0_9, %c17_10], %4 {strides = array<i32>} : memref<2x18x18xf32, #tpu.memory_space<vmem>>, vector<2x18x1xf32>,
    %c0_11 = arith.constant 0 : index
    %c0_12 = arith.constant 0 : index
    %c0_13 = arith.constant 0 : index
    %c0_14 = arith.constant 0 : index
    %7 = vector.load %arg2[%c0_11, %c0_12, %c0_13, %c0_14] : memref<1x2x16x16xf32, #tpu.memory_space<vmem>>, vector<1x2x16x16xf32>
    %8 = vector.shape_cast %7 : vector<1x2x16x16xf32> to vector<2x16x16xf32>
    %c0_15 = arith.constant 0 : index
    %c1 = arith.constant 1 : index
    %c1_16 = arith.constant 1 : index
    %9 = vector.load %arg5[%c0_15, %c1, %c1_16] : memref<2x18x18xf32, #tpu.memory_space<vmem>>, vector<2x16x16xf32>
    tpu.vector_store %arg5[%c0_15, %c1, %c1_16], %8 {strides = array<i32>} : memref<2x18x18xf32, #tpu.memory_space<vmem>>, vector<2x16x16xf32>,
    %cst_17 = arith.constant 0.000000e+00 : f32
    %10 = vector.broadcast %cst_17 : f32 to vector<16x16xf32>
    %cst_18 = arith.constant 0.000000e+00 : f32
    %11 = vector.broadcast %cst_18 : f32 to vector<16x16xf32>
    %c0_19 = arith.constant 0 : index
    %c0_20 = arith.constant 0 : index
    %c0_21 = arith.constant 0 : index
    %12 = vector.load %arg5[%c0_19, %c0_20, %c0_21] : memref<2x18x18xf32, #tpu.memory_space<vmem>>, vector<1x16x16xf32>
    %13 = vector.shape_cast %12 : vector<1x16x16xf32> to vector<16x16xf32>
    %c0_i32 = arith.constant 0 : i32
    %14 = arith.addi %0, %c0_i32 : i32
    %c9_i32 = arith.constant 9 : i32
    %15 = arith.muli %14, %c9_i32 : i32
    %c0_i32_22 = arith.constant 0 : i32
    %16 = arith.addi %15, %c0_i32_22 : i32
    %17 = arith.index_cast %16 : i32 to index
    %18 = memref.load %arg3[%17] : memref<36xf32, #tpu.memory_space<smem>>
    %19 = vector.broadcast %18 : f32 to vector<16x16xf32>
    %20 = arith.mulf %13, %19 : vector<16x16xf32>
    %21 = arith.addf %10, %20 : vector<16x16xf32>
    %c1_23 = arith.constant 1 : index
    %c0_24 = arith.constant 0 : index
    %c0_25 = arith.constant 0 : index
    %22 = vector.load %arg5[%c1_23, %c0_24, %c0_25] : memref<2x18x18xf32, #tpu.memory_space<vmem>>, vector<1x16x16xf32>
    %23 = vector.shape_cast %22 : vector<1x16x16xf32> to vector<16x16xf32>
    %c1_i32 = arith.constant 1 : i32
    %24 = arith.addi %0, %c1_i32 : i32
    %c9_i32_26 = arith.constant 9 : i32
    %25 = arith.muli %24, %c9_i32_26 : i32
    %c0_i32_27 = arith.constant 0 : i32
    %26 = arith.addi %25, %c0_i32_27 : i32
    %27 = arith.index_cast %26 : i32 to index
    %28 = memref.load %arg3[%27] : memref<36xf32, #tpu.memory_space<smem>>
    %29 = vector.broadcast %28 : f32 to vector<16x16xf32>
    %30 = arith.mulf %23, %29 : vector<16x16xf32>
    %31 = arith.addf %11, %30 : vector<16x16xf32>
    %c0_28 = arith.constant 0 : index
    %c0_29 = arith.constant 0 : index
    %c1_30 = arith.constant 1 : index
    %32 = vector.load %arg5[%c0_28, %c0_29, %c1_30] : memref<2x18x18xf32, #tpu.memory_space<vmem>>, vector<1x16x16xf32>
    %33 = vector.shape_cast %32 : vector<1x16x16xf32> to vector<16x16xf32>
    %c0_i32_31 = arith.constant 0 : i32
    %34 = arith.addi %0, %c0_i32_31 : i32
    %c9_i32_32 = arith.constant 9 : i32
    %35 = arith.muli %34, %c9_i32_32 : i32
    %c1_i32_33 = arith.constant 1 : i32
    %36 = arith.addi %35, %c1_i32_33 : i32
    %37 = arith.index_cast %36 : i32 to index
    %38 = memref.load %arg3[%37] : memref<36xf32, #tpu.memory_space<smem>>
    %39 = vector.broadcast %38 : f32 to vector<16x16xf32>
    %40 = arith.mulf %33, %39 : vector<16x16xf32>
    %41 = arith.addf %21, %40 : vector<16x16xf32>
    %c1_34 = arith.constant 1 : index
    %c0_35 = arith.constant 0 : index
    %c1_36 = arith.constant 1 : index
    %42 = vector.load %arg5[%c1_34, %c0_35, %c1_36] : memref<2x18x18xf32, #tpu.memory_space<vmem>>, vector<1x16x16xf32>
    %43 = vector.shape_cast %42 : vector<1x16x16xf32> to vector<16x16xf32>
    %c1_i32_37 = arith.constant 1 : i32
    %44 = arith.addi %0, %c1_i32_37 : i32
    %c9_i32_38 = arith.constant 9 : i32
    %45 = arith.muli %44, %c9_i32_38 : i32
    %c1_i32_39 = arith.constant 1 : i32
    %46 = arith.addi %45, %c1_i32_39 : i32
    %47 = arith.index_cast %46 : i32 to index
    %48 = memref.load %arg3[%47] : memref<36xf32, #tpu.memory_space<smem>>
    %49 = vector.broadcast %48 : f32 to vector<16x16xf32>
    %50 = arith.mulf %43, %49 : vector<16x16xf32>
    %51 = arith.addf %31, %50 : vector<16x16xf32>
    %c0_40 = arith.constant 0 : index
    %c0_41 = arith.constant 0 : index
    %c2 = arith.constant 2 : index
    %52 = vector.load %arg5[%c0_40, %c0_41, %c2] : memref<2x18x18xf32, #tpu.memory_space<vmem>>, vector<1x16x16xf32>
    %53 = vector.shape_cast %52 : vector<1x16x16xf32> to vector<16x16xf32>
    %c0_i32_42 = arith.constant 0 : i32
    %54 = arith.addi %0, %c0_i32_42 : i32
    %c9_i32_43 = arith.constant 9 : i32
    %55 = arith.muli %54, %c9_i32_43 : i32
    %c2_i32_44 = arith.constant 2 : i32
    %56 = arith.addi %55, %c2_i32_44 : i32
    %57 = arith.index_cast %56 : i32 to index
    %58 = memref.load %arg3[%57] : memref<36xf32, #tpu.memory_space<smem>>
    %59 = vector.broadcast %58 : f32 to vector<16x16xf32>
    %60 = arith.mulf %53, %59 : vector<16x16xf32>
    %61 = arith.addf %41, %60 : vector<16x16xf32>
    %c1_45 = arith.constant 1 : index
    %c0_46 = arith.constant 0 : index
    %c2_47 = arith.constant 2 : index
    %62 = vector.load %arg5[%c1_45, %c0_46, %c2_47] : memref<2x18x18xf32, #tpu.memory_space<vmem>>, vector<1x16x16xf32>
    %63 = vector.shape_cast %62 : vector<1x16x16xf32> to vector<16x16xf32>
    %c1_i32_48 = arith.constant 1 : i32
    %64 = arith.addi %0, %c1_i32_48 : i32
    %c9_i32_49 = arith.constant 9 : i32
    %65 = arith.muli %64, %c9_i32_49 : i32
    %c2_i32_50 = arith.constant 2 : i32
    %66 = arith.addi %65, %c2_i32_50 : i32
    %67 = arith.index_cast %66 : i32 to index
    %68 = memref.load %arg3[%67] : memref<36xf32, #tpu.memory_space<smem>>
    %69 = vector.broadcast %68 : f32 to vector<16x16xf32>
    %70 = arith.mulf %63, %69 : vector<16x16xf32>
    %71 = arith.addf %51, %70 : vector<16x16xf32>
    %c0_51 = arith.constant 0 : index
    %c1_52 = arith.constant 1 : index
    %c0_53 = arith.constant 0 : index
    %72 = vector.load %arg5[%c0_51, %c1_52, %c0_53] : memref<2x18x18xf32, #tpu.memory_space<vmem>>, vector<1x16x16xf32>
    %73 = vector.shape_cast %72 : vector<1x16x16xf32> to vector<16x16xf32>
    %c0_i32_54 = arith.constant 0 : i32
    %74 = arith.addi %0, %c0_i32_54 : i32
    %c9_i32_55 = arith.constant 9 : i32
    %75 = arith.muli %74, %c9_i32_55 : i32
    %c3_i32 = arith.constant 3 : i32
    %76 = arith.addi %75, %c3_i32 : i32
    %77 = arith.index_cast %76 : i32 to index
    %78 = memref.load %arg3[%77] : memref<36xf32, #tpu.memory_space<smem>>
    %79 = vector.broadcast %78 : f32 to vector<16x16xf32>
    %80 = arith.mulf %73, %79 : vector<16x16xf32>
    %81 = arith.addf %61, %80 : vector<16x16xf32>
    %c1_56 = arith.constant 1 : index
    %c1_57 = arith.constant 1 : index
    %c0_58 = arith.constant 0 : index
    %82 = vector.load %arg5[%c1_56, %c1_57, %c0_58] : memref<2x18x18xf32, #tpu.memory_space<vmem>>, vector<1x16x16xf32>
    %83 = vector.shape_cast %82 : vector<1x16x16xf32> to vector<16x16xf32>
    %c1_i32_59 = arith.constant 1 : i32
    %84 = arith.addi %0, %c1_i32_59 : i32
    %c9_i32_60 = arith.constant 9 : i32
    %85 = arith.muli %84, %c9_i32_60 : i32
    %c3_i32_61 = arith.constant 3 : i32
    %86 = arith.addi %85, %c3_i32_61 : i32
    %87 = arith.index_cast %86 : i32 to index
    %88 = memref.load %arg3[%87] : memref<36xf32, #tpu.memory_space<smem>>
    %89 = vector.broadcast %88 : f32 to vector<16x16xf32>
    %90 = arith.mulf %83, %89 : vector<16x16xf32>
    %91 = arith.addf %71, %90 : vector<16x16xf32>
    %c0_62 = arith.constant 0 : index
    %c1_63 = arith.constant 1 : index
    %c1_64 = arith.constant 1 : index
    %92 = vector.load %arg5[%c0_62, %c1_63, %c1_64] : memref<2x18x18xf32, #tpu.memory_space<vmem>>, vector<1x16x16xf32>
    %93 = vector.shape_cast %92 : vector<1x16x16xf32> to vector<16x16xf32>
    %c0_i32_65 = arith.constant 0 : i32
    %94 = arith.addi %0, %c0_i32_65 : i32
    %c9_i32_66 = arith.constant 9 : i32
    %95 = arith.muli %94, %c9_i32_66 : i32
    %c4_i32 = arith.constant 4 : i32
    %96 = arith.addi %95, %c4_i32 : i32
    %97 = arith.index_cast %96 : i32 to index
    %98 = memref.load %arg3[%97] : memref<36xf32, #tpu.memory_space<smem>>
    %99 = vector.broadcast %98 : f32 to vector<16x16xf32>
    %100 = arith.mulf %93, %99 : vector<16x16xf32>
    %101 = arith.addf %81, %100 : vector<16x16xf32>
    %c1_67 = arith.constant 1 : index
    %c1_68 = arith.constant 1 : index
    %c1_69 = arith.constant 1 : index
    %102 = vector.load %arg5[%c1_67, %c1_68, %c1_69] : memref<2x18x18xf32, #tpu.memory_space<vmem>>, vector<1x16x16xf32>
    %103 = vector.shape_cast %102 : vector<1x16x16xf32> to vector<16x16xf32>
    %c1_i32_70 = arith.constant 1 : i32
    %104 = arith.addi %0, %c1_i32_70 : i32
    %c9_i32_71 = arith.constant 9 : i32
    %105 = arith.muli %104, %c9_i32_71 : i32
    %c4_i32_72 = arith.constant 4 : i32
    %106 = arith.addi %105, %c4_i32_72 : i32
    %107 = arith.index_cast %106 : i32 to index
    %108 = memref.load %arg3[%107] : memref<36xf32, #tpu.memory_space<smem>>
    %109 = vector.broadcast %108 : f32 to vector<16x16xf32>
    %110 = arith.mulf %103, %109 : vector<16x16xf32>
    %111 = arith.addf %91, %110 : vector<16x16xf32>
    %c0_73 = arith.constant 0 : index
    %c1_74 = arith.constant 1 : index
    %c2_75 = arith.constant 2 : index
    %112 = vector.load %arg5[%c0_73, %c1_74, %c2_75] : memref<2x18x18xf32, #tpu.memory_space<vmem>>, vector<1x16x16xf32>
    %113 = vector.shape_cast %112 : vector<1x16x16xf32> to vector<16x16xf32>
    %c0_i32_76 = arith.constant 0 : i32
    %114 = arith.addi %0, %c0_i32_76 : i32
    %c9_i32_77 = arith.constant 9 : i32
    %115 = arith.muli %114, %c9_i32_77 : i32
    %c5_i32 = arith.constant 5 : i32
    %116 = arith.addi %115, %c5_i32 : i32
    %117 = arith.index_cast %116 : i32 to index
    %118 = memref.load %arg3[%117] : memref<36xf32, #tpu.memory_space<smem>>
    %119 = vector.broadcast %118 : f32 to vector<16x16xf32>
    %120 = arith.mulf %113, %119 : vector<16x16xf32>
    %121 = arith.addf %101, %120 : vector<16x16xf32>
    %c1_78 = arith.constant 1 : index
    %c1_79 = arith.constant 1 : index
    %c2_80 = arith.constant 2 : index
    %122 = vector.load %arg5[%c1_78, %c1_79, %c2_80] : memref<2x18x18xf32, #tpu.memory_space<vmem>>, vector<1x16x16xf32>
    %123 = vector.shape_cast %122 : vector<1x16x16xf32> to vector<16x16xf32>
    %c1_i32_81 = arith.constant 1 : i32
    %124 = arith.addi %0, %c1_i32_81 : i32
    %c9_i32_82 = arith.constant 9 : i32
    %125 = arith.muli %124, %c9_i32_82 : i32
    %c5_i32_83 = arith.constant 5 : i32
    %126 = arith.addi %125, %c5_i32_83 : i32
    %127 = arith.index_cast %126 : i32 to index
    %128 = memref.load %arg3[%127] : memref<36xf32, #tpu.memory_space<smem>>
    %129 = vector.broadcast %128 : f32 to vector<16x16xf32>
    %130 = arith.mulf %123, %129 : vector<16x16xf32>
    %131 = arith.addf %111, %130 : vector<16x16xf32>
    %c0_84 = arith.constant 0 : index
    %c2_85 = arith.constant 2 : index
    %c0_86 = arith.constant 0 : index
    %132 = vector.load %arg5[%c0_84, %c2_85, %c0_86] : memref<2x18x18xf32, #tpu.memory_space<vmem>>, vector<1x16x16xf32>
    %133 = vector.shape_cast %132 : vector<1x16x16xf32> to vector<16x16xf32>
    %c0_i32_87 = arith.constant 0 : i32
    %134 = arith.addi %0, %c0_i32_87 : i32
    %c9_i32_88 = arith.constant 9 : i32
    %135 = arith.muli %134, %c9_i32_88 : i32
    %c6_i32 = arith.constant 6 : i32
    %136 = arith.addi %135, %c6_i32 : i32
    %137 = arith.index_cast %136 : i32 to index
    %138 = memref.load %arg3[%137] : memref<36xf32, #tpu.memory_space<smem>>
    %139 = vector.broadcast %138 : f32 to vector<16x16xf32>
    %140 = arith.mulf %133, %139 : vector<16x16xf32>
    %141 = arith.addf %121, %140 : vector<16x16xf32>
    %c1_89 = arith.constant 1 : index
    %c2_90 = arith.constant 2 : index
    %c0_91 = arith.constant 0 : index
    %142 = vector.load %arg5[%c1_89, %c2_90, %c0_91] : memref<2x18x18xf32, #tpu.memory_space<vmem>>, vector<1x16x16xf32>
    %143 = vector.shape_cast %142 : vector<1x16x16xf32> to vector<16x16xf32>
    %c1_i32_92 = arith.constant 1 : i32
    %144 = arith.addi %0, %c1_i32_92 : i32
    %c9_i32_93 = arith.constant 9 : i32
    %145 = arith.muli %144, %c9_i32_93 : i32
    %c6_i32_94 = arith.constant 6 : i32
    %146 = arith.addi %145, %c6_i32_94 : i32
    %147 = arith.index_cast %146 : i32 to index
    %148 = memref.load %arg3[%147] : memref<36xf32, #tpu.memory_space<smem>>
    %149 = vector.broadcast %148 : f32 to vector<16x16xf32>
    %150 = arith.mulf %143, %149 : vector<16x16xf32>
    %151 = arith.addf %131, %150 : vector<16x16xf32>
    %c0_95 = arith.constant 0 : index
    %c2_96 = arith.constant 2 : index
    %c1_97 = arith.constant 1 : index
    %152 = vector.load %arg5[%c0_95, %c2_96, %c1_97] : memref<2x18x18xf32, #tpu.memory_space<vmem>>, vector<1x16x16xf32>
    %153 = vector.shape_cast %152 : vector<1x16x16xf32> to vector<16x16xf32>
    %c0_i32_98 = arith.constant 0 : i32
    %154 = arith.addi %0, %c0_i32_98 : i32
    %c9_i32_99 = arith.constant 9 : i32
    %155 = arith.muli %154, %c9_i32_99 : i32
    %c7_i32 = arith.constant 7 : i32
    %156 = arith.addi %155, %c7_i32 : i32
    %157 = arith.index_cast %156 : i32 to index
    %158 = memref.load %arg3[%157] : memref<36xf32, #tpu.memory_space<smem>>
    %159 = vector.broadcast %158 : f32 to vector<16x16xf32>
    %160 = arith.mulf %153, %159 : vector<16x16xf32>
    %161 = arith.addf %141, %160 : vector<16x16xf32>
    %c1_100 = arith.constant 1 : index
    %c2_101 = arith.constant 2 : index
    %c1_102 = arith.constant 1 : index
    %162 = vector.load %arg5[%c1_100, %c2_101, %c1_102] : memref<2x18x18xf32, #tpu.memory_space<vmem>>, vector<1x16x16xf32>
    %163 = vector.shape_cast %162 : vector<1x16x16xf32> to vector<16x16xf32>
    %c1_i32_103 = arith.constant 1 : i32
    %164 = arith.addi %0, %c1_i32_103 : i32
    %c9_i32_104 = arith.constant 9 : i32
    %165 = arith.muli %164, %c9_i32_104 : i32
    %c7_i32_105 = arith.constant 7 : i32
    %166 = arith.addi %165, %c7_i32_105 : i32
    %167 = arith.index_cast %166 : i32 to index
    %168 = memref.load %arg3[%167] : memref<36xf32, #tpu.memory_space<smem>>
    %169 = vector.broadcast %168 : f32 to vector<16x16xf32>
    %170 = arith.mulf %163, %169 : vector<16x16xf32>
    %171 = arith.addf %151, %170 : vector<16x16xf32>
    %c0_106 = arith.constant 0 : index
    %c2_107 = arith.constant 2 : index
    %c2_108 = arith.constant 2 : index
    %172 = vector.load %arg5[%c0_106, %c2_107, %c2_108] : memref<2x18x18xf32, #tpu.memory_space<vmem>>, vector<1x16x16xf32>
    %173 = vector.shape_cast %172 : vector<1x16x16xf32> to vector<16x16xf32>
    %c0_i32_109 = arith.constant 0 : i32
    %174 = arith.addi %0, %c0_i32_109 : i32
    %c9_i32_110 = arith.constant 9 : i32
    %175 = arith.muli %174, %c9_i32_110 : i32
    %c8_i32 = arith.constant 8 : i32
    %176 = arith.addi %175, %c8_i32 : i32
    %177 = arith.index_cast %176 : i32 to index
    %178 = memref.load %arg3[%177] : memref<36xf32, #tpu.memory_space<smem>>
    %179 = vector.broadcast %178 : f32 to vector<16x16xf32>
    %180 = arith.mulf %173, %179 : vector<16x16xf32>
    %181 = arith.addf %161, %180 : vector<16x16xf32>
    %c1_111 = arith.constant 1 : index
    %c2_112 = arith.constant 2 : index
    %c2_113 = arith.constant 2 : index
    %182 = vector.load %arg5[%c1_111, %c2_112, %c2_113] : memref<2x18x18xf32, #tpu.memory_space<vmem>>, vector<1x16x16xf32>
    %183 = vector.shape_cast %182 : vector<1x16x16xf32> to vector<16x16xf32>
    %c1_i32_114 = arith.constant 1 : i32
    %184 = arith.addi %0, %c1_i32_114 : i32
    %c9_i32_115 = arith.constant 9 : i32
    %185 = arith.muli %184, %c9_i32_115 : i32
    %c8_i32_116 = arith.constant 8 : i32
    %186 = arith.addi %185, %c8_i32_116 : i32
    %187 = arith.index_cast %186 : i32 to index
    %188 = memref.load %arg3[%187] : memref<36xf32, #tpu.memory_space<smem>>
    %189 = vector.broadcast %188 : f32 to vector<16x16xf32>
    %190 = arith.mulf %183, %189 : vector<16x16xf32>
    %191 = arith.addf %171, %190 : vector<16x16xf32>
    %c0_117 = arith.constant 0 : index
    %c0_118 = arith.constant 0 : index
    %c0_119 = arith.constant 0 : index
    %c0_120 = arith.constant 0 : index
    %192 = vector.load %arg4[%c0_117, %c0_118, %c0_119, %c0_120] : memref<1x2x16x16xf32, #tpu.memory_space<vmem>>, vector<1x1x16x16xf32>
    %193 = vector.shape_cast %192 : vector<1x1x16x16xf32> to vector<16x16xf32>
    %194 = vector.shape_cast %181 : vector<16x16xf32> to vector<1x1x16x16xf32>
    tpu.vector_store %arg4[%c0_117, %c0_118, %c0_119, %c0_120], %194 {strides = array<i32>} : memref<1x2x16x16xf32, #tpu.memory_space<vmem>>, vector<1x1x16x16xf32>,
    %c0_121 = arith.constant 0 : index
    %c1_122 = arith.constant 1 : index
    %c0_123 = arith.constant 0 : index
    %c0_124 = arith.constant 0 : index
    %195 = vector.load %arg4[%c0_121, %c1_122, %c0_123, %c0_124] : memref<1x2x16x16xf32, #tpu.memory_space<vmem>>, vector<1x1x16x16xf32>
    %196 = vector.shape_cast %195 : vector<1x1x16x16xf32> to vector<16x16xf32>
    %197 = vector.shape_cast %191 : vector<16x16xf32> to vector<1x1x16x16xf32>
    tpu.vector_store %arg4[%c0_121, %c1_122, %c0_123, %c0_124], %197 {strides = array<i32>} : memref<1x2x16x16xf32, #tpu.memory_space<vmem>>, vector<1x1x16x16xf32>,
    return
  }
  func.func @transform_0(%arg0: i32, %arg1: i32) -> (i32, i32, i32, i32) {
    %c0_i32 = arith.constant 0 : i32
    %c0_i32_0 = arith.constant 0 : i32
    %c0_i32_1 = arith.constant 0 : i32
    return %arg0, %arg1, %c0_i32, %c0_i32_0 : i32, i32, i32, i32
  }
  func.func @transform_1(%arg0: i32, %arg1: i32) -> i32 {
    %c0_i32 = arith.constant 0 : i32
    %c0_i32_0 = arith.constant 0 : i32
    return %c0_i32 : i32
  }
  func.func @transform_2(%arg0: i32, %arg1: i32) -> (i32, i32, i32, i32) {
    %c0_i32 = arith.constant 0 : i32
    %c0_i32_0 = arith.constant 0 : i32
    %c0_i32_1 = arith.constant 0 : i32
    return %arg0, %arg1, %c0_i32, %c0_i32_0 : i32, i32, i32, i32
  }
}

</mosaic_0001>

<llo_original>
// kernel: tpu_custom_call.1
$region0: #{tpu_custom_call.1}
  #allocation0 [shape = 'u32[]', space=smem, size = 0x4, offset = 0x4, fixed_abs, tag = 'smem constant byte address 0x4 - core index']
  #allocation1 [shape = 'u32[72,128]{1,0:T(1,128)}', space=vmem, size = 0x9000, scoped, tag = 'internal scratch']
  #allocation2 [shape = 'f32[2,18,18]{2,1,0:T(8,128)}', space=vmem, size = 0x6000, scoped, tag = 'scratch operand']
  %s0 = inlined_call_operand.hbm [shape: f32[2,4,16,16], index: 0, kind: input, shape index: {}]
  %s1 = inlined_call_operand.hbm [shape: f32[36], index: 1, kind: input, shape index: {}]
  %s2 = inlined_call_operand.hbm [shape: f32[2,4,16,16], index: 2, kind: output, shape index: {}]
  %s3 = sld [smem:[#allocation0]]
  $region49: #{tpu_custom_call.1} parent=0
    _
  %s5 = ssub.s32 1, %s3
  %s6 = scalar_select 0, %s5, %s3
  $region1: #{tpu_custom_call.1} parent=0
    #allocation3 [shape = 'u8[32768]{0}', space=vmem, size = 0x8000, scoped, tag = 'input window, operand 0']
    #allocation4 [shape = 's32[2]{0}', space=sflag, size = 0x8, scoped, tag = 'scoped memory for tpu_custom_call.1']
    #allocation5 [shape = 's32[2]{0}', space=sflag, size = 0x8, scoped, tag = 'scoped memory for tpu_custom_call.1']
    #allocation6 [shape = 's32[2]{0}', space=sflag, size = 0x8, scoped, tag = 'scoped memory for tpu_custom_call.1']
    #allocation7 [shape = 'u8[512]{0}', space=smem, size = 0x200, scoped, tag = 'input window, operand 1, single buffered']
    #allocation8 [shape = 'u8[32768]{0}', space=vmem, size = 0x8000, scoped, tag = 'output window, operand 0']
    %7 = vsyncpa [#allocation4], 0
    %s8 = scalar_lea.sflag [#allocation4], 1
    %9 = vsyncpa %s8, 0
    %10 = vsyncpa [#allocation6], 0
    %11 = vsyncpa [#allocation5], 0
    %s12 = scalar_lea.sflag [#allocation5], 1
    %13 = vsyncpa %s12, 0
    loop: start=0, step=1, limit=6
    $region2: #{tpu_custom_call.1} parent=1 // loop_pre_header
      _
    $region3: #{tpu_custom_call.1} parent=1 // loop_header
      %s15 = sphi 0, %s19
      %p16 = scmp.ge.s32.totalorder %s15, 6
      %s22 = sphi 0, %s34
      %s23 = sphi 0, %s30
      %s24 = sphi 0, %s22
      %s25 = sphi 0, %s23
      %s26 = sphi 0, %s24
      %s27 = sphi 0, %s25
      %s39 = sphi 0, %s41
      %s42 = sphi 0, %s39
      %s43 = sphi 0, %s42
      %s59 = sphi 0, %s43
      %s63 = sphi 0, %s63
      %s65 = sphi 0, %s63
      %s66 = sphi 0, %s65
      %s80 = sphi 0, %s66
      %s88 = sphi 0, %s90
      %s91 = sphi 0, %s88
      %s92 = sphi 0, %s91
      %s108 = sphi 0, %s92
    $region4: #{tpu_custom_call.1} parent=1 // loop_header_branch
      %18 = sbr.rel (%p16) target = $region8
    $region5: #{tpu_custom_call.1} parent=1 // loop_body
      %s20 = ssub.s32 %s15, 1
      %s21 = ssub.s32 %s15, 2
      %s28 = sadd.s32 1, %s23
      %p29 = scmp.ge.s32.totalorder %s28, 2
      %s30 = scalar_select %p29, 0, %s28
      %s31 = sadd.s32 1, %s22
      %s32 = scalar_select %p29, %s31, %s22
      %p33 = scmp.ge.s32.totalorder %s32, 2
      %s34 = scalar_select %p33, 0, %s32
      %s35 = ssub.s32 %s22, %s34
      %s36 = ssub.s32 %s23, %s30
      %s37 = sor.u32 %s35, %s36
      %p38 = scmp.eq.s32.totalorder %s37, 0
      %s40 = sadd.s32 %s39, 1
      %s41 = scalar_select %p38, %s39, %s40
      %p44 = pneg %p38
      %p45 = scmp.eq.s32.totalorder %s15, 3
      %p46 = por %p44, %p45
      %p47 = scmp.ne.s32.totalorder %s39, %s42
      %p48 = scmp.eq.s32.totalorder %s15, 0
      %p49 = por %p47, %p48
      %p50 = scmp.ne.s32.totalorder %s39, %s42
      %p51 = scmp.eq.s32.totalorder %s20, 3
      %p52 = por %p50, %p51
      %p53 = scmp.ne.s32.totalorder %s42, %s43
      %p54 = scmp.eq.s32.totalorder %s20, 0
      %p55 = por %p53, %p54
      %p56 = scmp.ne.s32.totalorder %s42, %s43
      %p57 = scmp.eq.s32.totalorder %s21, 3
      %p58 = por %p56, %p57
      %p60 = scmp.ne.s32.totalorder %s43, %s59
      %p61 = scmp.eq.s32.totalorder %s21, 0
      %p62 = por %p60, %p61
      %s64 = sadd.s32 %s63, 1
      %p67 = scmp.eq.s32.totalorder %s15, 3
      %p68 = scmp.ne.s32.totalorder %s63, %s65
      %p69 = scmp.eq.s32.totalorder %s15, 0
      %p70 = por %p68, %p69
      %p71 = scmp.ne.s32.totalorder %s63, %s65
      %p72 = scmp.eq.s32.totalorder %s20, 3
      %p73 = por %p71, %p72
      %p74 = scmp.ne.s32.totalorder %s65, %s66
      %p75 = scmp.eq.s32.totalorder %s20, 0
      %p76 = por %p74, %p75
      %p77 = scmp.ne.s32.totalorder %s65, %s66
      %p78 = scmp.eq.s32.totalorder %s21, 3
      %p79 = por %p77, %p78
      %p81 = scmp.ne.s32.totalorder %s66, %s80
      %p82 = scmp.eq.s32.totalorder %s21, 0
      %p83 = por %p81, %p82
      %s84 = ssub.s32 %s22, %s34
      %s85 = ssub.s32 %s23, %s30
      %s86 = sor.u32 %s84, %s85
      %p87 = scmp.eq.s32.totalorder %s86, 0
      %s89 = sadd.s32 %s88, 1
      %s90 = scalar_select %p87, %s88, %s89
      %p93 = pneg %p87
      %p94 = scmp.eq.s32.totalorder %s15, 3
      %p95 = por %p93, %p94
      %p96 = scmp.ne.s32.totalorder %s88, %s91
      %p97 = scmp.eq.s32.totalorder %s15, 0
      %p98 = por %p96, %p97
      %p99 = scmp.ne.s32.totalorder %s88, %s91
      %p100 = scmp.eq.s32.totalorder %s20, 3
      %p101 = por %p99, %p100
      %p102 = scmp.ne.s32.totalorder %s91, %s92
      %p103 = scmp.eq.s32.totalorder %s20, 0
      %p104 = por %p102, %p103
      %p105 = scmp.ne.s32.totalorder %s91, %s92
      %p106 = scmp.eq.s32.totalorder %s21, 3
      %p107 = por %p105, %p106
      %p109 = scmp.ne.s32.totalorder %s92, %s108
      %p110 = scmp.eq.s32.totalorder %s21, 0
      %p111 = por %p109, %p110
      %p112 = scmp.le.s32.totalorder 1, %s15
      %p113 = scmp.lt.s32.totalorder %s15, 5
      %p114 = pnand %p112, %p113
      %p115 = pneg %p114
      // Predicated region
      $region9: #{tpu_custom_call.1} parent=5 // pred_check
        _
      $region10: #{tpu_custom_call.1} parent=5 // pred_check_branch
        %117 = sbr.rel (%p114) target = $region12
      $region11: #{tpu_custom_call.1} parent=5 // pred_region
        %s118 = ssub.s32 %s15, 1
        // Predicated region
        $region13: #{tpu_custom_call.1} parent=11 // pred_check
          %p119 = pneg %p76
        $region14: #{tpu_custom_call.1} parent=11 // pred_check_branch
          %121 = sbr.rel (%p119) target = $region16
        $region15: #{tpu_custom_call.1} parent=11 // pred_region
          %123 = vsyncadd [#allocation6], 0
          %s125 = sshll.u32 %s1, 4
          %s126 = int_to_ptr.hbm [resolvable:$true] %s125
          %128 = dma.hbm_to_smem %s126, 16, [#allocation7], [#allocation6]
        $region16: #{tpu_custom_call.1} parent=11 // pred_fallthru
          _
      $region12: #{tpu_custom_call.1} parent=5 // pred_fallthru
        _
      %p129 = scmp.lt.s32.totalorder %s15, 4
      // Predicated region
      $region17: #{tpu_custom_call.1} parent=5 // pred_check
        %p130 = pneg %p129
      $region18: #{tpu_custom_call.1} parent=5 // pred_check_branch
        %132 = sbr.rel (%p130) target = $region20
      $region19: #{tpu_custom_call.1} parent=5 // pred_region
        // Predicated region
        $region21: #{tpu_custom_call.1} parent=19 // pred_check
          %p133 = pneg %p49
        $region22: #{tpu_custom_call.1} parent=19 // pred_check_branch
          %135 = sbr.rel (%p133) target = $region24
        $region23: #{tpu_custom_call.1} parent=19 // pred_region
          %s136 = sand.u32 %s39, 1
          %s137 = scalar_lea.sflag [#allocation4], %s136
          %s138 = sand.u32 %s39, 1
          %s139 = smul.addr %s138, 32
          %s140 = scalar_lea.vmem [#allocation3], %s139
          %s141 = smul.u32 2, %s23
          %143 = vsyncadd %s137, 0
          %s144 = smul.addr %s141, 2
          %s145 = smul.addr %s22, 8
          %s146 = sadd.s32 %s144, %s145
          %s147 = smul.addr %s146, 8
          %s148 = scalar_lea.hbm %s0, %s147
          %s149 = sshll.u32 %s148, 4
          %s150 = int_to_ptr.hbm [resolvable:$true] %s149
          %s151 = sshll.u32 %s140, 4
          %s152 = int_to_ptr.vmem [resolvable:$true] %s151
          %157 = dma.hbm_to_vmem [thread:$0]  %s150, 512, %s152, %s137, 128, 128, 8
        $region24: #{tpu_custom_call.1} parent=19 // pred_fallthru
          _
      $region20: #{tpu_custom_call.1} parent=5 // pred_fallthru
        _
      %p158 = scmp.le.s32.totalorder 1, %s15
      %p159 = scmp.lt.s32.totalorder %s15, 5
      %p160 = pnand %p158, %p159
      %p161 = pneg %p160
      // Predicated region
      $region25: #{tpu_custom_call.1} parent=5 // pred_check
        _
      $region26: #{tpu_custom_call.1} parent=5 // pred_check_branch
        %163 = sbr.rel (%p160) target = $region28
      $region27: #{tpu_custom_call.1} parent=5 // pred_region
        %s164 = ssub.s32 %s15, 1
        %s165 = sand.u32 %s42, 1
        %s166 = scalar_lea.sflag [#allocation4], %s165
        %s167 = sand.u32 %s42, 1
        %s168 = smul.addr %s167, 32
        %s169 = scalar_lea.vmem [#allocation3], %s168
        // Predicated region
        $region29: #{tpu_custom_call.1} parent=27 // pred_check
          %p170 = pneg %p55
        $region30: #{tpu_custom_call.1} parent=27 // pred_check_branch
          %172 = sbr.rel (%p170) target = $region32
        $region31: #{tpu_custom_call.1} parent=27 // pred_region
          %174 = dma.done %s166, 512
        $region32: #{tpu_custom_call.1} parent=27 // pred_fallthru
          _
        // Predicated region
        $region33: #{tpu_custom_call.1} parent=27 // pred_check
          %p175 = pneg %p76
        $region34: #{tpu_custom_call.1} parent=27 // pred_check_branch
          %177 = sbr.rel (%p175) target = $region36
        $region35: #{tpu_custom_call.1} parent=27 // pred_region
          %179 = dma.done [#allocation6], 16
        $region36: #{tpu_custom_call.1} parent=27 // pred_fallthru
          _
        %180 = sfence
        %s181 = sand.u32 %s42, 1
        %s182 = scalar_lea.sflag [#allocation4], %s181
        %s183 = sand.u32 %s42, 1
        %s184 = smul.addr %s183, 32
        %s185 = scalar_lea.vmem [#allocation3], %s184
        %p186 = pneg %p55
        %p187 = pneg %p52
        %p188 = pneg %p76
        %p189 = pneg %p73
        %p190 = pneg %p104
        %p191 = pneg %p101
        %s192 = sand.u32 %s91, 1
        %s193 = scalar_lea.sflag [#allocation5], %s192
        %s194 = sand.u32 %s91, 1
        %s195 = smul.addr %s194, 32
        %s196 = scalar_lea.vmem [#allocation8], %s195
        %s197 = smul.u32 2, %s25
        %s198 = smul.u32 2, %s25
        %s199 = smul.u32 %s25, 2
        %vm200 = vcmask 139264
        %201 = vst.msk [vmem:[#allocation2] sm:$0x1] %vm200, 0.0
        %202 = vst.msk [vmem:[#allocation2 + $0x18] sm:$0x1] %vm200, 0.0
        %203 = vst.msk [vmem:[#allocation2 + $0x11] sm:$0x1] %vm200, 0.0
        %204 = vst.msk [vmem:[#allocation2 + $0x29] sm:$0x1] %vm200, 0.0
        %vm205 = vcmask 7168
        %206 = vst.msk [vmem:[#allocation2] sm:$0xff] %vm205, 0.0
        %207 = vst.msk [vmem:[#allocation2 + $0x8] sm:$0xff] %vm205, 0.0
        %vm208 = vcmask 1024
        %209 = vst.msk [vmem:[#allocation2 + $0x10] sm:$0x3] %vm208, 0.0
        %210 = vst.msk [vmem:[#allocation2 + $0x18] sm:$0xff] %vm205, 0.0
        %211 = vst.msk [vmem:[#allocation2 + $0x20] sm:$0xff] %vm205, 0.0
        %212 = vst.msk [vmem:[#allocation2 + $0x28] sm:$0x3] %vm208, 0.0
        %vm213 = vcmask 146568
        %214 = vst.msk [vmem:[#allocation2] sm:$0xff] %vm213, 0.0
        %215 = vst.msk [vmem:[#allocation2 + $0x8] sm:$0xff] %vm213, 0.0
        %vm216 = vcmask 140424
        %217 = vst.msk [vmem:[#allocation2 + $0x10] sm:$0x3] %vm216, 0.0
        %218 = vst.msk [vmem:[#allocation2 + $0x18] sm:$0xff] %vm213, 0.0
        %219 = vst.msk [vmem:[#allocation2 + $0x20] sm:$0xff] %vm213, 0.0
        %220 = vst.msk [vmem:[#allocation2 + $0x28] sm:$0x3] %vm216, 0.0
        %v221 = vld [vmem:[%s169] sm:$0xff]
        %v222 = vld [vmem:[%s169 + $0x8] sm:$0xff]
        %v223 = vld [vmem:[%s169 + $0x10] sm:$0xff]
        %v224 = vld [vmem:[%s169 + $0x18] sm:$0xff]
        %229 = vrot.lane.b32.xlu0 %v221, 1
        %v230 = vpop.permute.xlu0 %229
        %231 = vrot.lane.b32.xlu0 %v222, 1
        %v232 = vpop.permute.xlu0 %231
        %233 = vrot.lane.b32.xlu0 %v223, 1
        %v234 = vpop.permute.xlu0 %233
        %235 = vrot.lane.b32.xlu0 %v224, 1
        %v236 = vpop.permute.xlu0 %235
        %vm241 = vcmask 138248
        %242 = vst.msk [vmem:[#allocation2 + $0x1] sm:$0xff] %vm241, %v230
        %243 = vst.msk [vmem:[#allocation2 + $0x9] sm:$0xff] %vm241, %v232
        %244 = vst.msk [vmem:[#allocation2 + $0x19] sm:$0xff] %vm241, %v234
        %245 = vst.msk [vmem:[#allocation2 + $0x21] sm:$0xff] %vm241, %v236
        %v246 = vld [vmem:[#allocation2] sm:$0xff]
        %v247 = vld [vmem:[#allocation2 + $0x8] sm:$0xff]
        %s248 = smul.u32 %s25, 18
        %s249 = sld [smem:[#allocation7 + %s248]]
        %v250 = vstv %s249
        %v251 = vmul.f32 %v246, %v250
        %v252 = vmul.f32 %v247, %v250
        %v253 = vadd.f32 %v251, 0.0
        %v254 = vadd.f32 %v252, 0.0
        %s255 = scalar_lea.vmem [#allocation2], 24
        %v256 = vld [vmem:[%s255] sm:$0xff]
        %v257 = vld [vmem:[%s255 + $0x8] sm:$0xff]
        %s258 = sadd.s32 %s199, 1
        %s259 = smul.u32 %s258, 9
        %s260 = sld [smem:[#allocation7 + %s259]]
        %v261 = vstv %s260
        %v262 = vmul.f32 %v256, %v261
        %v263 = vmul.f32 %v257, %v261
        %v264 = vadd.f32 %v262, 0.0
        %v265 = vadd.f32 %v263, 0.0
        %s266 = sadd.s32 %s248, 1
        %s267 = sld [smem:[#allocation7 + %s266]]
        %v268 = vstv %s267
        %v269 = vmul.f32 %v246, %v268
        %v270 = vmul.f32 %v247, %v268
        %273 = vrot.lane.b32.xlu0 %v269, 127
        %v274 = vpop.permute.xlu0 %273
        %275 = vrot.lane.b32.xlu0 %v270, 127
        %v276 = vpop.permute.xlu0 %275
        %v279 = vadd.f32 %v253, %v274
        %v280 = vadd.f32 %v254, %v276
        %s281 = sadd.s32 %s259, 1
        %s282 = sld [smem:[#allocation7 + %s281]]
        %v283 = vstv %s282
        %v284 = vmul.f32 %v256, %v283
        %v285 = vmul.f32 %v257, %v283
        %288 = vrot.lane.b32.xlu0 %v284, 127
        %v289 = vpop.permute.xlu0 %288
        %290 = vrot.lane.b32.xlu0 %v285, 127
        %v291 = vpop.permute.xlu0 %290
        %v294 = vadd.f32 %v264, %v289
        %v295 = vadd.f32 %v265, %v291
        %s296 = sadd.s32 %s248, 2
        %s297 = sld [smem:[#allocation7 + %s296]]
        %v298 = vstv %s297
        %v299 = vmul.f32 %v246, %v298
        %v300 = vmul.f32 %v247, %v298
        %303 = vrot.lane.b32.xlu0 %v299, 126
        %v304 = vpop.permute.xlu0 %303
        %305 = vrot.lane.b32.xlu0 %v300, 126
        %v306 = vpop.permute.xlu0 %305
        %v309 = vadd.f32 %v279, %v304
        %v310 = vadd.f32 %v280, %v306
        %s311 = sadd.s32 %s259, 2
        %s312 = sld [smem:[#allocation7 + %s311]]
        %v313 = vstv %s312
        %v314 = vmul.f32 %v256, %v313
        %v315 = vmul.f32 %v257, %v313
        %318 = vrot.lane.b32.xlu0 %v314, 126
        %v319 = vpop.permute.xlu0 %318
        %320 = vrot.lane.b32.xlu0 %v315, 126
        %v321 = vpop.permute.xlu0 %320
        %v324 = vadd.f32 %v294, %v319
        %v325 = vadd.f32 %v295, %v321
        %v326 = vld [vmem:[#allocation2 + $0x1] sm:$0xff]
        %v327 = vld [vmem:[#allocation2 + $0x9] sm:$0xff]
        %s328 = sadd.s32 %s248, 3
        %s329 = sld [smem:[#allocation7 + %s328]]
        %v330 = vstv %s329
        %v331 = vmul.f32 %v326, %v330
        %v332 = vmul.f32 %v327, %v330
        %v333 = vadd.f32 %v309, %v331
        %v334 = vadd.f32 %v310, %v332
        %v335 = vld [vmem:[%s255 + $0x1] sm:$0xff]
        %v336 = vld [vmem:[%s255 + $0x9] sm:$0xff]
        %s337 = sadd.s32 %s259, 3
        %s338 = sld [smem:[#allocation7 + %s337]]
        %v339 = vstv %s338
        %v340 = vmul.f32 %v335, %v339
        %v341 = vmul.f32 %v336, %v339
        %v342 = vadd.f32 %v324, %v340
        %v343 = vadd.f32 %v325, %v341
        %s344 = sadd.s32 %s248, 4
        %s345 = sld [smem:[#allocation7 + %s344]]
        %v346 = vstv %s345
        %v347 = vmul.f32 %v326, %v346
        %v348 = vmul.f32 %v327, %v346
        %351 = vrot.lane.b32.xlu0 %v347, 127
        %v352 = vpop.permute.xlu0 %351
        %353 = vrot.lane.b32.xlu0 %v348, 127
        %v354 = vpop.permute.xlu0 %353
        %v357 = vadd.f32 %v333, %v352
        %v358 = vadd.f32 %v334, %v354
        %s359 = sadd.s32 %s259, 4
        %s360 = sld [smem:[#allocation7 + %s359]]
        %v361 = vstv %s360
        %v362 = vmul.f32 %v335, %v361
        %v363 = vmul.f32 %v336, %v361
        %366 = vrot.lane.b32.xlu0 %v362, 127
        %v367 = vpop.permute.xlu0 %366
        %368 = vrot.lane.b32.xlu0 %v363, 127
        %v369 = vpop.permute.xlu0 %368
        %v372 = vadd.f32 %v342, %v367
        %v373 = vadd.f32 %v343, %v369
        %s374 = sadd.s32 %s248, 5
        %s375 = sld [smem:[#allocation7 + %s374]]
        %v376 = vstv %s375
        %v377 = vmul.f32 %v326, %v376
        %v378 = vmul.f32 %v327, %v376
        %381 = vrot.lane.b32.xlu0 %v377, 126
        %v382 = vpop.permute.xlu0 %381
        %383 = vrot.lane.b32.xlu0 %v378, 126
        %v384 = vpop.permute.xlu0 %383
        %v387 = vadd.f32 %v357, %v382
        %v388 = vadd.f32 %v358, %v384
        %s389 = sadd.s32 %s259, 5
        %s390 = sld [smem:[#allocation7 + %s389]]
        %v391 = vstv %s390
        %v392 = vmul.f32 %v335, %v391
        %v393 = vmul.f32 %v336, %v391
        %396 = vrot.lane.b32.xlu0 %v392, 126
        %v397 = vpop.permute.xlu0 %396
        %398 = vrot.lane.b32.xlu0 %v393, 126
        %v399 = vpop.permute.xlu0 %398
        %v402 = vadd.f32 %v372, %v397
        %v403 = vadd.f32 %v373, %v399
        %v404 = vld [vmem:[#allocation2 + $0x2] sm:$0xff]
        %v405 = vld [vmem:[#allocation2 + $0xa] sm:$0xff]
        %s406 = sadd.s32 %s248, 6
        %s407 = sld [smem:[#allocation7 + %s406]]
        %v408 = vstv %s407
        %v409 = vmul.f32 %v404, %v408
        %v410 = vmul.f32 %v405, %v408
        %v411 = vadd.f32 %v387, %v409
        %v412 = vadd.f32 %v388, %v410
        %v413 = vld [vmem:[%s255 + $0x2] sm:$0xff]
        %v414 = vld [vmem:[%s255 + $0xa] sm:$0xff]
        %s415 = sadd.s32 %s259, 6
        %s416 = sld [smem:[#allocation7 + %s415]]
        %v417 = vstv %s416
        %v418 = vmul.f32 %v413, %v417
        %v419 = vmul.f32 %v414, %v417
        %v420 = vadd.f32 %v402, %v418
        %v421 = vadd.f32 %v403, %v419
        %s422 = sadd.s32 %s248, 7
        %s423 = sld [smem:[#allocation7 + %s422]]
        %v424 = vstv %s423
        %v425 = vmul.f32 %v404, %v424
        %v426 = vmul.f32 %v405, %v424
        %429 = vrot.lane.b32.xlu0 %v425, 127
        %v430 = vpop.permute.xlu0 %429
        %431 = vrot.lane.b32.xlu0 %v426, 127
        %v432 = vpop.permute.xlu0 %431
        %v435 = vadd.f32 %v411, %v430
        %v436 = vadd.f32 %v412, %v432
        %s437 = sadd.s32 %s259, 7
        %s438 = sld [smem:[#allocation7 + %s437]]
        %v439 = vstv %s438
        %v440 = vmul.f32 %v413, %v439
        %v441 = vmul.f32 %v414, %v439
        %444 = vrot.lane.b32.xlu0 %v440, 127
        %v445 = vpop.permute.xlu0 %444
        %446 = vrot.lane.b32.xlu0 %v441, 127
        %v447 = vpop.permute.xlu0 %446
        %v450 = vadd.f32 %v420, %v445
        %v451 = vadd.f32 %v421, %v447
        %s452 = sadd.s32 %s248, 8
        %s453 = sld [smem:[#allocation7 + %s452]]
        %v454 = vstv %s453
        %v455 = vmul.f32 %v404, %v454
        %v456 = vmul.f32 %v405, %v454
        %459 = vrot.lane.b32.xlu0 %v455, 126
        %v460 = vpop.permute.xlu0 %459
        %461 = vrot.lane.b32.xlu0 %v456, 126
        %v462 = vpop.permute.xlu0 %461
        %v465 = vadd.f32 %v435, %v460
        %v466 = vadd.f32 %v436, %v462
        %s467 = sadd.s32 %s259, 8
        %s468 = sld [smem:[#allocation7 + %s467]]
        %v469 = vstv %s468
        %v470 = vmul.f32 %v413, %v469
        %v471 = vmul.f32 %v414, %v469
        %474 = vrot.lane.b32.xlu0 %v470, 126
        %v475 = vpop.permute.xlu0 %474
        %476 = vrot.lane.b32.xlu0 %v471, 126
        %v477 = vpop.permute.xlu0 %476
        %v480 = vadd.f32 %v450, %v475
        %v481 = vadd.f32 %v451, %v477
        %vm482 = vcmask 130048
        %483 = vst.msk [vmem:[%s196] sm:$0xff] %vm482, %v465
        %484 = vst.msk [vmem:[%s196 + $0x8] sm:$0xff] %vm482, %v466
        %s485 = scalar_lea.vmem %s196, 16 [#allocation8]
        %486 = vst.msk [vmem:[%s485] sm:$0xff] %vm482, %v480
        %487 = vst.msk [vmem:[%s485 + $0x8] sm:$0xff] %vm482, %v481
        %s488 = sand.u32 %s91, 1
        %s489 = scalar_lea.sflag [#allocation5], %s488
        %s490 = sand.u32 %s91, 1
        %s491 = smul.addr %s490, 32
        %s492 = scalar_lea.vmem [#allocation8], %s491
        // Predicated region
        $region37: #{tpu_custom_call.1} parent=27 // pred_check
          %p493 = pneg %p101
        $region38: #{tpu_custom_call.1} parent=27 // pred_check_branch
          %495 = sbr.rel (%p493) target = $region40
        $region39: #{tpu_custom_call.1} parent=27 // pred_region
          %s496 = smul.u32 2, %s25
          %498 = vsyncadd %s489, 0
          %s499 = smul.addr %s496, 2
          %s500 = smul.addr %s24, 8
          %s501 = sadd.s32 %s499, %s500
          %s502 = smul.addr %s501, 8
          %s503 = scalar_lea.hbm %s2, %s502
          %s504 = sshll.u32 %s492, 4
          %s505 = int_to_ptr.vmem [resolvable:$true] %s504
          %s506 = sshll.u32 %s503, 4
          %s507 = int_to_ptr.hbm [resolvable:$true] %s506
          %512 = dma.vmem_to_hbm [thread:$0]  %s505, 512, %s507, %s489, 128, 128, 8
        $region40: #{tpu_custom_call.1} parent=27 // pred_fallthru
          _
      $region28: #{tpu_custom_call.1} parent=5 // pred_fallthru
        _
      %p513 = scmp.le.s32.totalorder 2, %s15
      // Predicated region
      $region41: #{tpu_custom_call.1} parent=5 // pred_check
        %p514 = pneg %p513
      $region42: #{tpu_custom_call.1} parent=5 // pred_check_branch
        %516 = sbr.rel (%p514) target = $region44
      $region43: #{tpu_custom_call.1} parent=5 // pred_region
        %s517 = ssub.s32 %s15, 2
        // Predicated region
        $region45: #{tpu_custom_call.1} parent=43 // pred_check
          %p518 = pneg %p107
        $region46: #{tpu_custom_call.1} parent=43 // pred_check_branch
          %520 = sbr.rel (%p518) target = $region48
        $region47: #{tpu_custom_call.1} parent=43 // pred_region
          %s521 = sand.u32 %s92, 1
          %s522 = scalar_lea.sflag [#allocation5], %s521
          %s523 = sand.u32 %s92, 1
          %s524 = smul.addr %s523, 32
          %s525 = scalar_lea.vmem [#allocation8], %s524
          %527 = dma.done %s522, 512
        $region48: #{tpu_custom_call.1} parent=43 // pred_fallthru
          _
      $region44: #{tpu_custom_call.1} parent=5 // pred_fallthru
        _
    $region6: #{tpu_custom_call.1} parent=1 // loop_footer
      %s19 = sadd.s32 1, %s15
    $region7: #{tpu_custom_call.1} parent=1 // loop_footer_branch
      %14 = sbr.rel target = $region3
    $region8: #{tpu_custom_call.1} parent=1 // loop_exit
      _
    %528 = vsyncpa [#allocation4], 1
    %s529 = scalar_lea.sflag [#allocation4], 1
    %530 = vsyncpa %s529, 1
    %531 = vsyncpa [#allocation5], 1
    %s532 = scalar_lea.sflag [#allocation5], 1
    %533 = vsyncpa %s532, 1
    %534 = vsyncpa [#allocation6], 1
    %s535 = scalar_lea.sflag [#allocation6], 1
    %536 = vsyncpa %s535, 1

</llo_original>
